<compile_context>
chip_gen: v6e
topology: v6e:2x2x1
jax: 0.10.0
libtpu: 0.0.40
codegen_flags: <defaults>
</compile_context>

<pallas_src>
import jax
import jax.numpy as jnp
from jax.experimental import pallas as pl
from jax.experimental.pallas import tpu as pltpu


def _round_up(n, m):
    return ((n + m - 1) // m) * m


def attn_pool_kernel(x_ref, qw_ref, weff_ref, beff_ref, out_ref):
    """Fused attention pooling + depth-separable conv for one batch tile.

    x_ref    : (Bt, C, L)   input tile
    qw_ref   : (Q, C)       query embeddings, softmax scale (1/sqrt(C)) pre-folded
    weff_ref : (Q*C, C)     fused pointwise+depthwise weight, W_eff[q*C+i,o]=dw[o,q]*pw[o,i]
    beff_ref : (1, C)       fused bias: dw_b + pw_b * sum_q dw_w
    out_ref  : (Bt, C)      output slab
    """
    x = x_ref[...]                                   # (Bt, C, L)
    bt, c, _ = x.shape
    q = qw_ref.shape[0]

    # ---- logits: (Bt, Q, L). Scale already folded into qw. ----
    qb = jnp.broadcast_to(qw_ref[...], (bt, q, c))   # KB-scale weight replication
    s = jnp.einsum('bqc,bcl->bql', qb, x, preferred_element_type=jnp.float32)

    # ---- softmax over L (lane axis) ----
    s = s - jnp.max(s, axis=-1, keepdims=True)
    e = jnp.exp(s)
    attn = e * pl.reciprocal(jnp.sum(e, axis=-1, keepdims=True), approx=True)

    # ---- pooled values: (Bt, Q, C) = sum_l attn * x (contract L) ----
    pooled = jnp.einsum('bql,bcl->bqc', attn, x, preferred_element_type=jnp.float32)

    # ---- fused pointwise + depthwise conv: one MXU matmul over the Q*C axis ----
    z = jnp.dot(pooled.reshape(bt, q * c), weff_ref[...],
                preferred_element_type=jnp.float32) + beff_ref[...]   # (Bt, C)

    out_ref[...] = z.astype(out_ref.dtype)


def time_series_attention_pooling(x, embed_weight, pw_w, pw_b, dw_w, dw_b,
                                  *, batch_tile=None):
    """x: (B, C, L); embed_weight: (Q, C); pw_w: (C, C); dw_w: (C, Q). Returns (B, C, 1)."""
    B, C, L = x.shape
    Q = embed_weight.shape[0]
    f32 = jnp.float32

    # Fold both 1/C**0.25 scales into the query weights (scale^2 = 1/sqrt(C)).
    qw = embed_weight.astype(f32) * (C ** -0.5)                              # (Q, C)
    # Fused conv weight: W_eff[q*C+i, o] = dw_w[o, q] * pw_w[o, i].
    w3 = dw_w.astype(f32)[:, :, None] * pw_w.astype(f32)[:, None, :]         # (C_out, Q, C_in)
    w_eff = jnp.transpose(w3, (1, 2, 0)).reshape(Q * C, C)                   # (Q*C, C_out)
    # Fused bias: z = sum_{q,i} dw*pw*pooled + (pw_b * sum_q dw_w + dw_b).
    b_eff = (dw_b.astype(f32)
             + pw_b.astype(f32) * jnp.sum(dw_w.astype(f32), axis=1)).reshape(1, C)

    # ---- batch-tile selection: big (VMEM-sized), multiple of 8, >=2 grid steps ----
    if batch_tile is None:
        # Padded VMEM bytes per batch element of the x block ((8,128) tiling).
        per_elem = _round_up(C, 8) * _round_up(L, 128) * x.dtype.itemsize
        # Keep the double-buffered x input <= ~8 MiB -> safe under a 32 MiB scoped VMEM
        # limit on every generation (v7x: 64 MiB physical; v5e/v6e: 128 MiB).
        bt_vmem = max(8, (8 << 20) // (2 * per_elem))
        # Megacore: keep >= 2 grid steps when B allows so both v7x TensorCores run.
        bt_core = _round_up(pl.cdiv(B, 2), 8) if B >= 16 else B
        batch_tile = min(bt_vmem, bt_core)

    if B <= 8 or batch_tile >= B:
        bt = B                                      # single step; block spans full batch
    else:
        bt = max(8, (min(batch_tile, B) // 8) * 8)  # multiple of 8 for the out block
    nb = pl.cdiv(B, bt)                             # ragged tail handled by Pallas masking

    out2d = pl.pallas_call(
        attn_pool_kernel,
        out_shape=jax.ShapeDtypeStruct((B, C), x.dtype),
        grid=(nb,),
        in_specs=[
            pl.BlockSpec((bt, C, L), lambda i: (i, 0, 0)),    # x batch tile
            pl.BlockSpec((Q, C), lambda i: (0, 0)),           # queries (resident)
            pl.BlockSpec((Q * C, C), lambda i: (0, 0)),       # fused conv weight (resident)
            pl.BlockSpec((1, C), lambda i: (0, 0)),           # fused bias (resident)
        ],
        out_specs=pl.BlockSpec((bt, C), lambda i: (i, 0)),
        compiler_params=pltpu.CompilerParams(
            dimension_semantics=("parallel",),
            vmem_limit_bytes=32 * 1024 * 1024),
    )(x, qw, w_eff, b_eff)

    return out2d.reshape(B, C, 1)


def reference_forward(x, embed_weight, pw_w, pw_b, dw_w, dw_b):
    """Pure-JAX reference mirroring the PyTorch module."""
    B, C, L = x.shape
    scale = C ** 0.25
    queries = (embed_weight.T / scale)[None]                      # (1, C, Q)
    keys = x / scale                                              # (B, C, L)
    dot = jnp.matmul(jnp.transpose(keys, (0, 2, 1)), queries)     # (B, L, Q)
    dot = jax.nn.softmax(dot, axis=1)
    out = jnp.matmul(x, dot)                                      # (B, C, Q)
    y = jnp.einsum('oc,bcq->boq', pw_w, out) + pw_b[None, :, None]
    z = jnp.sum(dw_w[None] * y, axis=2, keepdims=True) + dw_b[None, :, None]
    return z


if __name__ == "__main__":
    C, L, Q = 32, 16, 4   # num_queries = 4 > 1 -> conv branch active

    key = jax.random.PRNGKey(0)
    k_x, k_emb, k_pw, k_pwb, k_dw, k_dwb, k_x2 = jax.random.split(key, 7)

    # nn.Embedding(num_queries, c).weight -> (Q, C)
    embed_weight = jax.random.normal(k_emb, (Q, C), dtype=jnp.float32)
    # pointwise Conv1d(C, C, 1, bias=True): weight (C, C, 1) -> (C, C), bias (C,)
    pw_w = jax.random.normal(k_pw, (C, C), dtype=jnp.float32) * 0.1
    pw_b = jax.random.normal(k_pwb, (C,), dtype=jnp.float32) * 0.1
    # depthwise Conv1d(C, C, Q, groups=C, bias=True): weight (C, 1, Q) -> (C, Q), bias (C,)
    dw_w = jax.random.normal(k_dw, (C, Q), dtype=jnp.float32) * 0.1
    dw_b = jax.random.normal(k_dwb, (C,), dtype=jnp.float32) * 0.1

    # Test 1: tiny batch (single grid step, block spans the full batch).
    B1 = 2
    x1 = jax.random.normal(k_x, (B1, C, L), dtype=jnp.float32)
    out1 = jax.block_until_ready(
        time_series_attention_pooling(x1, embed_weight, pw_w, pw_b, dw_w, dw_b))
    ref1 = reference_forward(x1, embed_weight, pw_w, pw_b, dw_w, dw_b)
    assert out1.shape == (B1, C, 1), out1.shape
    # Tolerance accommodates the EUP approximate reciprocal in the softmax denominator;
    # any semantic bug produces errors >> this.
    assert jnp.allclose(out1, ref1, atol=5e-3, rtol=5e-3), \
        f"max abs err {jnp.max(jnp.abs(out1 - ref1))}"

    # Test 2: larger batch -> multi-step parallel grid (exercises tiling path).
    B2 = 16
    x2 = jax.random.normal(k_x2, (B2, C, L), dtype=jnp.float32)
    out2 = jax.block_until_ready(
        time_series_attention_pooling(x2, embed_weight, pw_w, pw_b, dw_w, dw_b))
    ref2 = reference_forward(x2, embed_weight, pw_w, pw_b, dw_w, dw_b)
    assert out2.shape == (B2, C, 1), out2.shape
    assert jnp.allclose(out2, ref2, atol=5e-3, rtol=5e-3), \
        f"max abs err {jnp.max(jnp.abs(out2 - ref2))}"

    print("KERNEL_OK")
</pallas_src>

<mosaic_0001>
module attributes {stable_mosaic.version = 11 : i64} {
  func.func @attn_pool_kernel(%arg0: i32, %arg1: memref<2x32x16xf32, #tpu.memory_space<vmem>>, %arg2: memref<4x32xf32, #tpu.memory_space<vmem>>, %arg3: memref<128x32xf32, #tpu.memory_space<vmem>>, %arg4: memref<1x32xf32, #tpu.memory_space<vmem>>, %arg5: memref<2x32xf32, #tpu.memory_space<vmem>>) attributes {dimension_semantics = [#tpu.dimension_semantics<parallel>], iteration_bounds = array<i64: 1>, scalar_prefetch = 0 : i64, scratch_operands = 0 : i64, tpu.core_type = #tpu.core_type<tc>, window_params = [{transform_indices = @transform_0, window_bounds = array<i64: 2, 32, 16>}, {pipeline_mode = #tpu.pipeline_mode<synchronous>, transform_indices = @transform_1, window_bounds = array<i64: 4, 32>}, {pipeline_mode = #tpu.pipeline_mode<synchronous>, transform_indices = @transform_2, window_bounds = array<i64: 128, 32>}, {pipeline_mode = #tpu.pipeline_mode<synchronous>, transform_indices = @transform_3, window_bounds = array<i64: 1, 32>}, {transform_indices = @transform_4, window_bounds = array<i64: 2, 32>}]} {
    %c0 = arith.constant 0 : index
    %c0_0 = arith.constant 0 : index
    %c0_1 = arith.constant 0 : index
    %0 = vector.load %arg1[%c0, %c0_0, %c0_1] : memref<2x32x16xf32, #tpu.memory_space<vmem>>, vector<2x32x16xf32>
    %c0_2 = arith.constant 0 : index
    %c0_3 = arith.constant 0 : index
    %1 = vector.load %arg2[%c0_2, %c0_3] : memref<4x32xf32, #tpu.memory_space<vmem>>, vector<4x32xf32>
    %2 = vector.shape_cast %1 : vector<4x32xf32> to vector<1x4x32xf32>
    %3 = vector.broadcast %2 : vector<1x4x32xf32> to vector<2x4x32xf32>
    "tpu.trace_start"() <{level = 10 : i32, message = "bqc,bcl->bql"}> : () -> ()
    %cst = arith.constant dense<0.000000e+00> : vector<2x4x16xf32>
    %4 = tpu.matmul %3, %0, %cst {dimension_numbers = #tpu.dot_dimension_numbers<[2], [1], [1], [2], [0, 0, 0, 1, 1, 2], [0], [0]>} : vector<2x4x32xf32>, vector<2x32x16xf32>, vector<2x4x16xf32> -> vector<2x4x16xf32>
    "tpu.trace_stop"() : () -> ()
    %cst_4 = arith.constant dense<0xFF800000> : vector<2x4xf32>
    %5 = vector.multi_reduction <maximumf>, %4, %cst_4 [2] : vector<2x4x16xf32> to vector<2x4xf32>
    %6 = vector.shape_cast %5 : vector<2x4xf32> to vector<2x4x1xf32>
    %7 = vector.broadcast %6 : vector<2x4x1xf32> to vector<2x4x16xf32>
    %8 = arith.subf %4, %7 : vector<2x4x16xf32>
    %9 = math.exp %8 : vector<2x4x16xf32>
    %cst_5 = arith.constant dense<0.000000e+00> : vector<2x4xf32>
    %10 = vector.multi_reduction <add>, %9, %cst_5 [2] : vector<2x4x16xf32> to vector<2x4xf32>
    %11 = vector.shape_cast %10 : vector<2x4xf32> to vector<2x4x1xf32>
    %12 = tpu.reciprocal %11 {approx = true} : vector<2x4x1xf32> -> vector<2x4x1xf32>
    %13 = vector.broadcast %12 : vector<2x4x1xf32> to vector<2x4x16xf32>
    %14 = arith.mulf %9, %13 : vector<2x4x16xf32>
    "tpu.trace_start"() <{level = 10 : i32, message = "bql,bcl->bqc"}> : () -> ()
    %cst_6 = arith.constant dense<0.000000e+00> : vector<2x4x32xf32>
    %15 = tpu.matmul %14, %0, %cst_6 {dimension_numbers = #tpu.dot_dimension_numbers<[2], [2], [1], [1], [0, 0, 0, 1, 1, 1], [0], [0]>} : vector<2x4x16xf32>, vector<2x32x16xf32>, vector<2x4x32xf32> -> vector<2x4x32xf32>
    "tpu.trace_stop"() : () -> ()
    %16 = vector.shape_cast %15 : vector<2x4x32xf32> to vector<2x128xf32>
    %c0_7 = arith.constant 0 : index
    %c0_8 = arith.constant 0 : index
    %17 = vector.load %arg3[%c0_7, %c0_8] : memref<128x32xf32, #tpu.memory_space<vmem>>, vector<128x32xf32>
    %cst_9 = arith.constant dense<0.000000e+00> : vector<2x32xf32>
    %18 = tpu.matmul %16, %17, %cst_9 {dimension_numbers = #tpu.dot_dimension_numbers<[1], [0], [0], [1], [0, 0, 1, 1], [], []>} : vector<2x128xf32>, vector<128x32xf32>, vector<2x32xf32> -> vector<2x32xf32>
    %c0_10 = arith.constant 0 : index
    %c0_11 = arith.constant 0 : index
    %19 = vector.load %arg4[%c0_10, %c0_11] : memref<1x32xf32, #tpu.memory_space<vmem>>, vector<1x32xf32>
    %20 = vector.broadcast %19 : vector<1x32xf32> to vector<2x32xf32>
    %21 = arith.addf %18, %20 : vector<2x32xf32>
    %c0_12 = arith.constant 0 : index
    %c0_13 = arith.constant 0 : index
    %22 = vector.load %arg5[%c0_12, %c0_13] : memref<2x32xf32, #tpu.memory_space<vmem>>, vector<2x32xf32>
    tpu.vector_store %arg5[%c0_12, %c0_13], %21 {strides = array<i32>} : memref<2x32xf32, #tpu.memory_space<vmem>>, vector<2x32xf32>,
    return
  }
  func.func @transform_0(%arg0: i32) -> (i32, i32, i32) {
    %c0_i32 = arith.constant 0 : i32
    %c0_i32_0 = arith.constant 0 : i32
    %c0_i32_1 = arith.constant 0 : i32
    return %arg0, %c0_i32, %c0_i32_0 : i32, i32, i32
  }
  func.func @transform_1(%arg0: i32) -> (i32, i32) {
    %c0_i32 = arith.constant 0 : i32
    %c0_i32_0 = arith.constant 0 : i32
    %c0_i32_1 = arith.constant 0 : i32
    return %c0_i32, %c0_i32_0 : i32, i32
  }
  func.func @transform_2(%arg0: i32) -> (i32, i32) {
    %c0_i32 = arith.constant 0 : i32
    %c0_i32_0 = arith.constant 0 : i32
    %c0_i32_1 = arith.constant 0 : i32
    return %c0_i32, %c0_i32_0 : i32, i32
  }
  func.func @transform_3(%arg0: i32) -> (i32, i32) {
    %c0_i32 = arith.constant 0 : i32
    %c0_i32_0 = arith.constant 0 : i32
    %c0_i32_1 = arith.constant 0 : i32
    return %c0_i32, %c0_i32_0 : i32, i32
  }
  func.func @transform_4(%arg0: i32) -> (i32, i32) {
    %c0_i32 = arith.constant 0 : i32
    %c0_i32_0 = arith.constant 0 : i32
    return %arg0, %c0_i32 : i32, i32
  }
}

</mosaic_0001>

<llo_original>
// kernel: tpu_custom_call.1
$region0: #{tpu_custom_call.1}
  #allocation0 [shape = 'u32[]', space=smem, size = 0x4, offset = 0x4, fixed_abs, tag = 'smem constant byte address 0x4 - core index']
  #allocation1 [shape = 'u32[144,128]{1,0:T(1,128)}', space=vmem, size = 0x12000, scoped, tag = 'internal scratch']
  %s0 = inlined_call_operand.vmem [shape: f32[2,32,16], index: 0, kind: input, shape index: {}]
  %s1 = inlined_call_operand.vmem [shape: f32[4,32], index: 1, kind: input, shape index: {}]
  %s2 = inlined_call_operand.vmem [shape: f32[128,32], index: 2, kind: input, shape index: {}]
  %s3 = inlined_call_operand.vmem [shape: f32[1,32], index: 3, kind: input, shape index: {}]
  %s4 = inlined_call_operand.hbm [shape: f32[2,32], index: 4, kind: output, shape index: {}]
  %s5 = sld [smem:[#allocation0]]
  $region26: #{tpu_custom_call.1} parent=0
    _
  %s7 = ssub.s32 1, %s5
  %s8 = scalar_select 0, %s7, %s5
  $region1: #{tpu_custom_call.1} parent=0
    #allocation2 [shape = 'u8[1024]{0}', space=vmem, size = 0x400, scoped, tag = 'output window, operand 0, single buffered']
    #allocation3 [shape = 's32[1]{0}', space=sflag, size = 0x4, scoped, tag = 'scoped memory for tpu_custom_call.1']
    %9 = vsyncpa [#allocation3], 0
    // Predicated region
    $region2: #{tpu_custom_call.1} parent=1 // pred_check
      _
    $region3: #{tpu_custom_call.1} parent=1 // pred_check_branch
      %11 = sbr.rel (0) target = $region5
    $region4: #{tpu_custom_call.1} parent=1 // pred_region
      _
    $region5: #{tpu_custom_call.1} parent=1 // pred_fallthru
      _
    // Predicated region
    $region6: #{tpu_custom_call.1} parent=1 // pred_check
      _
    $region7: #{tpu_custom_call.1} parent=1 // pred_check_branch
      %13 = sbr.rel (0) target = $region9
    $region8: #{tpu_custom_call.1} parent=1 // pred_region
      _
    $region9: #{tpu_custom_call.1} parent=1 // pred_fallthru
      _
    // Predicated region
    $region10: #{tpu_custom_call.1} parent=1 // pred_check
      _
    $region11: #{tpu_custom_call.1} parent=1 // pred_check_branch
      %15 = sbr.rel (0) target = $region13
    $region12: #{tpu_custom_call.1} parent=1 // pred_region
      _
    $region13: #{tpu_custom_call.1} parent=1 // pred_fallthru
      _
    // Predicated region
    $region14: #{tpu_custom_call.1} parent=1 // pred_check
      _
    $region15: #{tpu_custom_call.1} parent=1 // pred_check_branch
      %17 = sbr.rel (0) target = $region17
    $region16: #{tpu_custom_call.1} parent=1 // pred_region
      _
    $region17: #{tpu_custom_call.1} parent=1 // pred_fallthru
      _
    %v18 = vld [vmem:[%s0] sm:$0xff]
    %v19 = vld [vmem:[%s0 + $0x8] sm:$0xff]
    %v20 = vld [vmem:[%s0 + $0x10] sm:$0xff]
    %v21 = vld [vmem:[%s0 + $0x18] sm:$0xff]
    %v22 = vld [vmem:[%s0 + $0x20] sm:$0xff]
    %v23 = vld [vmem:[%s0 + $0x28] sm:$0xff]
    %v24 = vld [vmem:[%s0 + $0x30] sm:$0xff]
    %v25 = vld [vmem:[%s0 + $0x38] sm:$0xff]
    %v26 = vld [vmem:[%s1] sm:$0xf]
    %vm27 = vcmask 261120
    %v29 = vsel %vm27, %v26, 0
    %31 = vmatprep.subr.mxu0 0.0
    %32 = vmatpush1.msra.mxu0 0.0
    %33 = vmatprep.subr.mxu0 0.0
    %34 = vmatpush1.msra.mxu0 0.0
    %35 = vmatprep.subr.mxu0 0.0
    %36 = vmatpush1.msra.mxu0 0.0
    %37 = vmatprep.subr.mxu0 0.0
    %38 = vmatpush1.msra.mxu0 0.0
    %39 = vmatprep.subr.mxu0 0.0
    %40 = vmatpush1.msra.mxu0 0.0
    %41 = vmatprep.subr.mxu0 0.0
    %42 = vmatpush1.msra.mxu0 0.0
    %43 = vmatprep.subr.mxu0 0.0
    %44 = vmatpush1.msra.mxu0 0.0
    %45 = vmatprep.subr.mxu0 0.0
    %46 = vmatpush1.msra.mxu0 0.0
    %47 = vmatprep.subr.mxu0 0.0
    %48 = vmatpush1.msra.mxu0 0.0
    %49 = vmatprep.subr.mxu0 0.0
    %50 = vmatpush1.msra.mxu0 0.0
    %51 = vmatprep.subr.mxu0 0.0
    %52 = vmatpush1.msra.mxu0 0.0
    %53 = vmatprep.subr.mxu0 0.0
    %54 = vmatpush1.msra.mxu0 0.0
    %55 = vmatprep.subr.mxu0 0.0
    %56 = vmatpush1.msra.mxu0 %v21
    %57 = vmatprep.subr.mxu0 0.0
    %58 = vmatpush1.msra.mxu0 %v20
    %59 = vmatprep.subr.mxu0 0.0
    %60 = vmatpush1.msra.mxu0 %v19
    %61 = vmatprep.subr.mxu0 0.0
    %62 = vmatpush1.msra.mxu0 %v18
    %63 = vmatprep.subr.mxu0 0.0
    %64 = vmatpush2.msra.mxu0 0.0
    %65 = vmatprep.subr.mxu0 0.0
    %66 = vmatpush2.msra.mxu0 0.0
    %67 = vmatprep.subr.mxu0 0.0
    %68 = vmatpush2.msra.mxu0 0.0
    %69 = vmatprep.subr.mxu0 0.0
    %70 = vmatpush2.msra.mxu0 0.0
    %71 = vmatprep.subr.mxu0 0.0
    %72 = vmatpush2.msra.mxu0 0.0
    %73 = vmatprep.subr.mxu0 0.0
    %74 = vmatpush2.msra.mxu0 0.0
    %75 = vmatprep.subr.mxu0 0.0
    %76 = vmatpush2.msra.mxu0 0.0
    %77 = vmatprep.subr.mxu0 0.0
    %78 = vmatpush2.msra.mxu0 0.0
    %79 = vmatprep.subr.mxu0 0.0
    %80 = vmatpush2.msra.mxu0 0.0
    %81 = vmatprep.subr.mxu0 0.0
    %82 = vmatpush2.msra.mxu0 0.0
    %83 = vmatprep.subr.mxu0 0.0
    %84 = vmatpush2.msra.mxu0 0.0
    %85 = vmatprep.subr.mxu0 0.0
    %86 = vmatpush2.msra.mxu0 0.0
    %87 = vmatprep.subr.mxu0 0.0
    %88 = vmatpush2.msra.mxu0 0.0
    %89 = vmatprep.subr.mxu0 0.0
    %90 = vmatpush2.msra.mxu0 0.0
    %91 = vmatprep.subr.mxu0 0.0
    %92 = vmatpush2.msra.mxu0 0.0
    %93 = vmatprep.subr.mxu0 0.0
    %94 = vmatpush2.msra.mxu0 0.0
    %95 = vmatprep.mubr.f32.mxu0 0.0
    %96 = vmatmul.mubr.f32.gmra.mxu0 %v29
    %v97 = vpop.f32.mrf.mxu0
    %v98 = vadd.f32 0.0, %v97
    %v99 = vpop.f32.mrf.mxu0
    %100 = vdwg.mxu0
    %101 = vmatprep.subr.mxu0 0.0
    %102 = vmatpush1.msra.mxu0 0.0
    %103 = vmatprep.subr.mxu0 0.0
    %104 = vmatpush1.msra.mxu0 0.0
    %105 = vmatprep.subr.mxu0 0.0
    %106 = vmatpush1.msra.mxu0 0.0
    %107 = vmatprep.subr.mxu0 0.0
    %108 = vmatpush1.msra.mxu0 0.0
    %109 = vmatprep.subr.mxu0 0.0
    %110 = vmatpush1.msra.mxu0 0.0
    %111 = vmatprep.subr.mxu0 0.0
    %112 = vmatpush1.msra.mxu0 0.0
    %113 = vmatprep.subr.mxu0 0.0
    %114 = vmatpush1.msra.mxu0 0.0
    %115 = vmatprep.subr.mxu0 0.0
    %116 = vmatpush1.msra.mxu0 0.0
    %117 = vmatprep.subr.mxu0 0.0
    %118 = vmatpush1.msra.mxu0 0.0
    %119 = vmatprep.subr.mxu0 0.0
    %120 = vmatpush1.msra.mxu0 0.0
    %121 = vmatprep.subr.mxu0 0.0
    %122 = vmatpush1.msra.mxu0 0.0
    %123 = vmatprep.subr.mxu0 0.0
    %124 = vmatpush1.msra.mxu0 0.0
    %125 = vmatprep.subr.mxu0 0.0
    %126 = vmatpush1.msra.mxu0 %v25
    %127 = vmatprep.subr.mxu0 0.0
    %128 = vmatpush1.msra.mxu0 %v24
    %129 = vmatprep.subr.mxu0 0.0
    %130 = vmatpush1.msra.mxu0 %v23
    %131 = vmatprep.subr.mxu0 0.0
    %132 = vmatpush1.msra.mxu0 %v22
    %133 = vmatprep.subr.mxu0 0.0
    %134 = vmatpush2.msra.mxu0 0.0
    %135 = vmatprep.subr.mxu0 0.0
    %136 = vmatpush2.msra.mxu0 0.0
    %137 = vmatprep.subr.mxu0 0.0
    %138 = vmatpush2.msra.mxu0 0.0
    %139 = vmatprep.subr.mxu0 0.0
    %140 = vmatpush2.msra.mxu0 0.0
    %141 = vmatprep.subr.mxu0 0.0
    %142 = vmatpush2.msra.mxu0 0.0
    %143 = vmatprep.subr.mxu0 0.0
    %144 = vmatpush2.msra.mxu0 0.0
    %145 = vmatprep.subr.mxu0 0.0
    %146 = vmatpush2.msra.mxu0 0.0
    %147 = vmatprep.subr.mxu0 0.0
    %148 = vmatpush2.msra.mxu0 0.0
    %149 = vmatprep.subr.mxu0 0.0
    %150 = vmatpush2.msra.mxu0 0.0
    %151 = vmatprep.subr.mxu0 0.0
    %152 = vmatpush2.msra.mxu0 0.0
    %153 = vmatprep.subr.mxu0 0.0
    %154 = vmatpush2.msra.mxu0 0.0
    %155 = vmatprep.subr.mxu0 0.0
    %156 = vmatpush2.msra.mxu0 0.0
    %157 = vmatprep.subr.mxu0 0.0
    %158 = vmatpush2.msra.mxu0 0.0
    %159 = vmatprep.subr.mxu0 0.0
    %160 = vmatpush2.msra.mxu0 0.0
    %161 = vmatprep.subr.mxu0 0.0
    %162 = vmatpush2.msra.mxu0 0.0
    %163 = vmatprep.subr.mxu0 0.0
    %164 = vmatpush2.msra.mxu0 0.0
    %165 = vmatprep.mubr.f32.mxu0 0.0
    %166 = vmatmul.mubr.f32.gmra.mxu0 %v29
    %v167 = vpop.f32.mrf.mxu0
    %v168 = vadd.f32 0.0, %v167
    %v169 = vpop.f32.mrf.mxu0
    %170 = vdwg.mxu0
    %vm171 = vcmask 125952
    %v172 = vsel %vm171, %v98, -inf
    %173 = vmax.xlane.f32.xlu0 %v172
    %v174 = vpop.xlane.xlu0 %173
    %v175 = vsel %vm171, %v168, -inf
    %176 = vmax.xlane.f32.xlu0 %v175
    %v177 = vpop.xlane.xlu0 %176
    %v178 = vsub.f32 %v98, %v174
    %v179 = vsub.f32 %v168, %v177
    %v180 = vmul.f32 %v178, 1.442695
    %v181 = vpow.pop %v180
    %v182 = vmul.f32 %v179, 1.442695
    %v183 = vpow.pop %v182
    %v184 = vsel %vm171, %v181, 0.0
    %185 = vadd.xlane.f32.xlu0 %v184
    %v186 = vpop.xlane.xlu0 %185
    %v187 = vsel %vm171, %v183, 0.0
    %188 = vadd.xlane.f32.xlu0 %v187
    %v189 = vpop.xlane.xlu0 %188
    %v190 = vrcp.pop %v186
    %v191 = vrcp.pop %v189
    %v192 = vmul.f32 %v181, %v190
    %v193 = vmul.f32 %v183, %v191
    %vm194 = vcmask 130048
    %v196 = vsel %vm194, %v192, 0
    %v199 = vsel %vm194, %v18, 0
    %v202 = vsel %vm194, %v19, 0
    %v205 = vsel %vm194, %v20, 0
    %v208 = vsel %vm194, %v21, 0
    %210 = vmatprep.subr.mxu0 0.0
    %211 = vmatpush1.xpose.msra.mxu0 0.0
    %212 = vmatprep.subr.mxu0 0.0
    %213 = vmatpush1.xpose.msra.mxu0 0.0
    %214 = vmatprep.subr.mxu0 0.0
    %215 = vmatpush1.xpose.msra.mxu0 0.0
    %216 = vmatprep.subr.mxu0 0.0
    %217 = vmatpush1.xpose.msra.mxu0 0.0
    %218 = vmatprep.subr.mxu0 0.0
    %219 = vmatpush1.xpose.msra.mxu0 0.0
    %220 = vmatprep.subr.mxu0 0.0
    %221 = vmatpush1.xpose.msra.mxu0 0.0
    %222 = vmatprep.subr.mxu0 0.0
    %223 = vmatpush1.xpose.msra.mxu0 0.0
    %224 = vmatprep.subr.mxu0 0.0
    %225 = vmatpush1.xpose.msra.mxu0 0.0
    %226 = vmatprep.subr.mxu0 0.0
    %227 = vmatpush1.xpose.msra.mxu0 0.0
    %228 = vmatprep.subr.mxu0 0.0
    %229 = vmatpush1.xpose.msra.mxu0 0.0
    %230 = vmatprep.subr.mxu0 0.0
    %231 = vmatpush1.xpose.msra.mxu0 0.0
    %232 = vmatprep.subr.mxu0 0.0
    %233 = vmatpush1.xpose.msra.mxu0 0.0
    %234 = vmatprep.subr.mxu0 0.0
    %235 = vmatpush1.xpose.msra.mxu0 %v208
    %236 = vmatprep.subr.mxu0 0.0
    %237 = vmatpush1.xpose.msra.mxu0 %v205
    %238 = vmatprep.subr.mxu0 0.0
    %239 = vmatpush1.xpose.msra.mxu0 %v202
    %240 = vmatprep.subr.mxu0 0.0
    %241 = vmatpush1.xpose.msra.mxu0 %v199
    %242 = vmatprep.subr.mxu0 0.0
    %243 = vmatpush2.xpose.msra.mxu0 0.0
    %244 = vmatprep.subr.mxu0 0.0
    %245 = vmatpush2.xpose.msra.mxu0 0.0
    %246 = vmatprep.subr.mxu0 0.0
    %247 = vmatpush2.xpose.msra.mxu0 0.0
    %248 = vmatprep.subr.mxu0 0.0
    %249 = vmatpush2.xpose.msra.mxu0 0.0
    %250 = vmatprep.subr.mxu0 0.0
    %251 = vmatpush2.xpose.msra.mxu0 0.0
    %252 = vmatprep.subr.mxu0 0.0
    %253 = vmatpush2.xpose.msra.mxu0 0.0
    %254 = vmatprep.subr.mxu0 0.0
    %255 = vmatpush2.xpose.msra.mxu0 0.0
    %256 = vmatprep.subr.mxu0 0.0
    %257 = vmatpush2.xpose.msra.mxu0 0.0
    %258 = vmatprep.subr.mxu0 0.0
    %259 = vmatpush2.xpose.msra.mxu0 0.0
    %260 = vmatprep.subr.mxu0 0.0
    %261 = vmatpush2.xpose.msra.mxu0 0.0
    %262 = vmatprep.subr.mxu0 0.0
    %263 = vmatpush2.xpose.msra.mxu0 0.0
    %264 = vmatprep.subr.mxu0 0.0
    %265 = vmatpush2.xpose.msra.mxu0 0.0
    %266 = vmatprep.subr.mxu0 0.0
    %267 = vmatpush2.xpose.msra.mxu0 0.0
    %268 = vmatprep.subr.mxu0 0.0
    %269 = vmatpush2.xpose.msra.mxu0 0.0
    %270 = vmatprep.subr.mxu0 0.0
    %271 = vmatpush2.xpose.msra.mxu0 0.0
    %272 = vmatprep.subr.mxu0 0.0
    %273 = vmatpush2.xpose.msra.mxu0 0.0
    %274 = vmatprep.mubr.f32.mxu0 0.0
    %275 = vmatmul.mubr.f32.gmra.mxu0 %v196
    %v276 = vpop.f32.mrf.mxu0
    %v277 = vadd.f32 0.0, %v276
    %v278 = vpop.f32.mrf.mxu0
    %279 = vdwg.mxu0
    %v281 = vsel %vm194, %v193, 0
    %v284 = vsel %vm194, %v22, 0
    %v287 = vsel %vm194, %v23, 0
    %v290 = vsel %vm194, %v24, 0
    %v293 = vsel %vm194, %v25, 0
    %295 = vmatprep.subr.mxu0 0.0
    %296 = vmatpush1.xpose.msra.mxu0 0.0
    %297 = vmatprep.subr.mxu0 0.0
    %298 = vmatpush1.xpose.msra.mxu0 0.0
    %299 = vmatprep.subr.mxu0 0.0
    %300 = vmatpush1.xpose.msra.mxu0 0.0
    %301 = vmatprep.subr.mxu0 0.0
    %302 = vmatpush1.xpose.msra.mxu0 0.0
    %303 = vmatprep.subr.mxu0 0.0
    %304 = vmatpush1.xpose.msra.mxu0 0.0
    %305 = vmatprep.subr.mxu0 0.0
    %306 = vmatpush1.xpose.msra.mxu0 0.0
    %307 = vmatprep.subr.mxu0 0.0
    %308 = vmatpush1.xpose.msra.mxu0 0.0
    %309 = vmatprep.subr.mxu0 0.0
    %310 = vmatpush1.xpose.msra.mxu0 0.0
    %311 = vmatprep.subr.mxu0 0.0
    %312 = vmatpush1.xpose.msra.mxu0 0.0
    %313 = vmatprep.subr.mxu0 0.0
    %314 = vmatpush1.xpose.msra.mxu0 0.0
    %315 = vmatprep.subr.mxu0 0.0
    %316 = vmatpush1.xpose.msra.mxu0 0.0
    %317 = vmatprep.subr.mxu0 0.0
    %318 = vmatpush1.xpose.msra.mxu0 0.0
    %319 = vmatprep.subr.mxu0 0.0
    %320 = vmatpush1.xpose.msra.mxu0 %v293
    %321 = vmatprep.subr.mxu0 0.0
    %322 = vmatpush1.xpose.msra.mxu0 %v290
    %323 = vmatprep.subr.mxu0 0.0
    %324 = vmatpush1.xpose.msra.mxu0 %v287
    %325 = vmatprep.subr.mxu0 0.0
    %326 = vmatpush1.xpose.msra.mxu0 %v284
    %327 = vmatprep.subr.mxu0 0.0
    %328 = vmatpush2.xpose.msra.mxu0 0.0
    %329 = vmatprep.subr.mxu0 0.0
    %330 = vmatpush2.xpose.msra.mxu0 0.0
    %331 = vmatprep.subr.mxu0 0.0
    %332 = vmatpush2.xpose.msra.mxu0 0.0
    %333 = vmatprep.subr.mxu0 0.0
    %334 = vmatpush2.xpose.msra.mxu0 0.0
    %335 = vmatprep.subr.mxu0 0.0
    %336 = vmatpush2.xpose.msra.mxu0 0.0
    %337 = vmatprep.subr.mxu0 0.0
    %338 = vmatpush2.xpose.msra.mxu0 0.0
    %339 = vmatprep.subr.mxu0 0.0
    %340 = vmatpush2.xpose.msra.mxu0 0.0
    %341 = vmatprep.subr.mxu0 0.0
    %342 = vmatpush2.xpose.msra.mxu0 0.0
    %343 = vmatprep.subr.mxu0 0.0
    %344 = vmatpush2.xpose.msra.mxu0 0.0
    %345 = vmatprep.subr.mxu0 0.0
    %346 = vmatpush2.xpose.msra.mxu0 0.0
    %347 = vmatprep.subr.mxu0 0.0
    %348 = vmatpush2.xpose.msra.mxu0 0.0
    %349 = vmatprep.subr.mxu0 0.0
    %350 = vmatpush2.xpose.msra.mxu0 0.0
    %351 = vmatprep.subr.mxu0 0.0
    %352 = vmatpush2.xpose.msra.mxu0 0.0
    %353 = vmatprep.subr.mxu0 0.0
    %354 = vmatpush2.xpose.msra.mxu0 0.0
    %355 = vmatprep.subr.mxu0 0.0
    %356 = vmatpush2.xpose.msra.mxu0 0.0
    %357 = vmatprep.subr.mxu0 0.0
    %358 = vmatpush2.xpose.msra.mxu0 0.0
    %359 = vmatprep.mubr.f32.mxu0 0.0
    %360 = vmatmul.mubr.f32.gmra.mxu0 %v281
    %v361 = vpop.f32.mrf.mxu0
    %v362 = vadd.f32 0.0, %v361
    %v363 = vpop.f32.mrf.mxu0
    %364 = vdwg.mxu0
    %v366 = vunpack.c.l.s4 1983009808
    %v367 = vunpack.c.0.s8 %v366
    %v368 = vlaneseq
    %v369 = vshrl.u32 %v368, 7
    %v370 = vsub.s32 %v367, %v369
    %v371 = vrot.slane %v277, %v370
    %v373 = vunpack.c.l.s4 1983009808
    %v374 = vunpack.c.0.s8 %v373
    %v375 = vlaneseq
    %v376 = vshrl.u32 %v375, 7
    %v377 = vsub.s32 %v374, %v376
    %v378 = vrot.slane %v362, %v377
    %v379 = vcombine.low %v371, %v378
    %v380 = vcombine.high %v371, %v378
    %v382 = vunpack.c.l.s4 1934713408
    %v383 = vunpack.c.0.s8 %v382
    %v384 = vlaneseq
    %v385 = vshrl.u32 %v384, 7
    %v386 = vsub.s32 %v383, %v385
    %v387 = vrot.slane %v379, %v386
    %v389 = vunpack.c.l.s4 1934713408
    %v390 = vunpack.c.0.s8 %v389
    %v391 = vlaneseq
    %v392 = vshrl.u32 %v391, 7
    %v393 = vsub.s32 %v390, %v392
    %v394 = vrot.slane %v380, %v393
    %v395 = vcombine.high %v387, 0.0
    %v396 = vcombine.high %v394, 0.0
    %398 = vrot.lane.b32.xlu0 %v395, 32
    %v399 = vpop.permute.xlu0 %398
    %402 = vrot.lane.b32.xlu0 %v394, 64
    %v403 = vpop.permute.xlu0 %402
    %406 = vrot.lane.b32.xlu0 %v396, 96
    %v407 = vpop.permute.xlu0 %406
    %v409 = vsel %vm27, %v387, %v399
    %vm410 = vcmask 523264
    %v411 = vsel %vm410, %v409, %v403
    %vm412 = vcmask 785408
    %v413 = vsel %vm412, %v411, %v407
    %v414 = vld [vmem:[%s2] sm:$0xff]
    %v415 = vld [vmem:[%s2 + $0x8] sm:$0xff]
    %v416 = vld [vmem:[%s2 + $0x10] sm:$0xff]
    %v417 = vld [vmem:[%s2 + $0x18] sm:$0xff]
    %v418 = vld [vmem:[%s2 + $0x20] sm:$0xff]
    %v419 = vld [vmem:[%s2 + $0x28] sm:$0xff]
    %v420 = vld [vmem:[%s2 + $0x30] sm:$0xff]
    %v421 = vld [vmem:[%s2 + $0x38] sm:$0xff]
    %v422 = vld [vmem:[%s2 + $0x40] sm:$0xff]
    %v423 = vld [vmem:[%s2 + $0x48] sm:$0xff]
    %v424 = vld [vmem:[%s2 + $0x50] sm:$0xff]
    %v425 = vld [vmem:[%s2 + $0x58] sm:$0xff]
    %v426 = vld [vmem:[%s2 + $0x60] sm:$0xff]
    %v427 = vld [vmem:[%s2 + $0x68] sm:$0xff]
    %v428 = vld [vmem:[%s2 + $0x70] sm:$0xff]
    %v429 = vld [vmem:[%s2 + $0x78] sm:$0xff]
    %v430 = vld [vmem:[%s3] sm:$0x1]
    %v432 = vlaneseq
    %v433 = vshrl.u32 %v432, 7
    %v434 = vsub.s32 0, %v433
    %v435 = vrot.slane %v430, %v434
    %437 = vmatprep.subr.mxu0 0.0
    %438 = vmatpush1.msra.mxu0 %v429
    %439 = vmatprep.subr.mxu0 0.0
    %440 = vmatpush1.msra.mxu0 %v428
    %441 = vmatprep.subr.mxu0 0.0
    %442 = vmatpush1.msra.mxu0 %v427
    %443 = vmatprep.subr.mxu0 0.0
    %444 = vmatpush1.msra.mxu0 %v426
    %445 = vmatprep.subr.mxu0 0.0
    %446 = vmatpush1.msra.mxu0 %v425
    %447 = vmatprep.subr.mxu0 0.0
    %448 = vmatpush1.msra.mxu0 %v424
    %449 = vmatprep.subr.mxu0 0.0
    %450 = vmatpush1.msra.mxu0 %v423
    %451 = vmatprep.subr.mxu0 0.0
    %452 = vmatpush1.msra.mxu0 %v422
    %453 = vmatprep.subr.mxu0 0.0
    %454 = vmatpush1.msra.mxu0 %v421
    %455 = vmatprep.subr.mxu0 0.0
    %456 = vmatpush1.msra.mxu0 %v420
    %457 = vmatprep.subr.mxu0 0.0
    %458 = vmatpush1.msra.mxu0 %v419
    %459 = vmatprep.subr.mxu0 0.0
    %460 = vmatpush1.msra.mxu0 %v418
    %461 = vmatprep.subr.mxu0 0.0
    %462 = vmatpush1.msra.mxu0 %v417
    %463 = vmatprep.subr.mxu0 0.0
    %464 = vmatpush1.msra.mxu0 %v416
    %465 = vmatprep.subr.mxu0 0.0
    %466 = vmatpush1.msra.mxu0 %v415
    %467 = vmatprep.subr.mxu0 0.0
    %468 = vmatpush1.msra.mxu0 %v414
    %469 = vmatprep.subr.mxu0 0.0
    %470 = vmatpush2.msra.mxu0 0.0
    %471 = vmatprep.subr.mxu0 0.0
    %472 = vmatpush2.msra.mxu0 0.0
    %473 = vmatprep.subr.mxu0 0.0
    %474 = vmatpush2.msra.mxu0 0.0
    %475 = vmatprep.subr.mxu0 0.0
    %476 = vmatpush2.msra.mxu0 0.0
    %477 = vmatprep.subr.mxu0 0.0
    %478 = vmatpush2.msra.mxu0 0.0
    %479 = vmatprep.subr.mxu0 0.0
    %480 = vmatpush2.msra.mxu0 0.0
    %481 = vmatprep.subr.mxu0 0.0
    %482 = vmatpush2.msra.mxu0 0.0
    %483 = vmatprep.subr.mxu0 0.0
    %484 = vmatpush2.msra.mxu0 0.0
    %485 = vmatprep.subr.mxu0 0.0
    %486 = vmatpush2.msra.mxu0 0.0
    %487 = vmatprep.subr.mxu0 0.0
    %488 = vmatpush2.msra.mxu0 0.0
    %489 = vmatprep.subr.mxu0 0.0
    %490 = vmatpush2.msra.mxu0 0.0
    %491 = vmatprep.subr.mxu0 0.0
    %492 = vmatpush2.msra.mxu0 0.0
    %493 = vmatprep.subr.mxu0 0.0
    %494 = vmatpush2.msra.mxu0 0.0
    %495 = vmatprep.subr.mxu0 0.0
    %496 = vmatpush2.msra.mxu0 0.0
    %497 = vmatprep.subr.mxu0 0.0
    %498 = vmatpush2.msra.mxu0 0.0
    %499 = vmatprep.subr.mxu0 0.0
    %500 = vmatpush2.msra.mxu0 0.0
    %501 = vmatprep.mubr.f32.mxu0 0.0
    %502 = vmatmul.mubr.f32.gmra.mxu0 %v413
    %v503 = vpop.f32.mrf.mxu0
    %v504 = vadd.f32 %v435, %v503
    %v505 = vpop.f32.mrf.mxu0
    %506 = vdwg.mxu0
    %vm507 = vcmask 254976
    %508 = vst.msk [vmem:[#allocation2] sm:$0x3] %vm507, %v504
    // Predicated region
    $region18: #{tpu_custom_call.1} parent=1 // pred_check
      _
    $region19: #{tpu_custom_call.1} parent=1 // pred_check_branch
      %510 = sbr.rel (0) target = $region21
    $region20: #{tpu_custom_call.1} parent=1 // pred_region
      %s512 = ssub.s32 32, 32
      %513 = vsyncadd [#allocation3], %s512
      %s515 = sshll.u32 [#allocation2], 4
      %s516 = int_to_ptr.vmem [resolvable:$true] %s515
      %518 = dma.vmem_to_hbm [thread:$0]  %s516, 32, %s4, [#allocation3]
    $region21: #{tpu_custom_call.1} parent=1 // pred_fallthru
      _
    // Predicated region
    $region22: #{tpu_custom_call.1} parent=1 // pred_check
      _
    $region23: #{tpu_custom_call.1} parent=1 // pred_check_branch
      %520 = sbr.rel (0) target = $region25
    $region24: #{tpu_custom_call.1} parent=1 // pred_region
      %521 = dma.done [#allocation3], 32
    $region25: #{tpu_custom_call.1} parent=1 // pred_fallthru
      _
    %522 = vsyncpa [#allocation3], 1

</llo_original>
